<compile_context>
chip_gen: v7x
topology: tpu7x:2x2x1
jax: 0.10.0
libtpu: 0.0.40
codegen_flags: <defaults>
</compile_context>

<pallas_src>
from functools import partial

import jax
import jax.numpy as jnp
import numpy as np
from jax.experimental import pallas as pl
from jax.experimental.pallas import tpu as pltpu


_BLOCK_BUDGET_BYTES = 4 * 1024 * 1024   # per input block (x2 double-buffer ~ 8 MiB VMEM)
_T_BLOCK_BYTES = 512 * 1024             # max bytes per row along time in one block
_VMEM_LIMIT_BYTES = 32 * 1024 * 1024    # safe on v5e/v6e (128 MiB) and v7x (64 MiB)


def _round_up(x, m):
    return ((x + m - 1) // m) * m


def _time_mean_kernel(x_ref, o_ref, acc_ref, *, inv_n, tile_t, k0, lo, hi, n_k, use_mask):
    """Sum a (tile_r, tile_t) time slab into an f32 (tile_r, 1) accumulator.

    Grid = (row_tiles, time_tiles); the time axis is the last ('arbitrary')
    reduction axis, so acc_ref persists across it and the output block is
    written once, at the final time step.
    """
    k = pl.program_id(1)

    @pl.when(k == 0)
    def _init():
        acc_ref[...] = jnp.zeros_like(acc_ref)

    x = x_ref[...].astype(jnp.float32)
    if use_mask:
        # Absolute time position of each element in this block; mask everything
        # outside the contiguous window [lo, hi).  This also masks the garbage
        # tail when tile_t does not divide the time axis.
        t_abs = (k + k0) * tile_t + jax.lax.broadcasted_iota(jnp.int32, x.shape, 1)
        x = jnp.where((t_abs >= lo) & (t_abs < hi), x, 0.0)
    acc_ref[...] += jnp.sum(x, axis=-1, keepdims=True)

    @pl.when(k == n_k - 1)
    def _finalize():
        # TODO(synk): output is a (tile_r, 1) column (masked stores); lane-dense
        # output layout is a minor further win but adds an in-kernel transpose.
        o_ref[...] = (acc_ref[...] * inv_n).astype(o_ref.dtype)


def _mean_window_pallas(x2d: jax.Array, lo: int, hi: int, n_valid: int) -> jax.Array:
    """Mean over the contiguous time window [lo, hi) of a (rows, T) array, keepdim."""
    r, t = x2d.shape
    itemsize = x2d.dtype.itemsize
    pack = 8 * max(1, 4 // itemsize)            # sublane packing: 8 f32 / 16 bf16 / 32 int8

    # --- time tile: full T if it is small, else a multiple of 128 ---
    if t * itemsize <= _T_BLOCK_BYTES:
        tile_t = t
    else:
        tile_t = max(128, ((_T_BLOCK_BYTES // itemsize) // 128) * 128)

    # --- row tile: fill the block budget, dtype-aware, keep >=2 tiles (megacore) ---
    tile_r = max(pack, ((_BLOCK_BUDGET_BYTES // (tile_t * itemsize)) // pack) * pack)
    tile_r = min(tile_r, _round_up(r, pack))
    if r > pack:
        tile_r = min(tile_r, _round_up((r + 1) // 2, pack))

    # --- time grid only covers blocks intersecting the window [lo, hi) ---
    k0 = lo // tile_t
    n_k = max(1, -(-hi // tile_t) - k0)
    use_mask = (lo % tile_t != 0) or (hi % tile_t != 0)

    kernel = partial(
        _time_mean_kernel,
        inv_n=1.0 / float(n_valid),
        tile_t=tile_t, k0=k0, lo=lo, hi=hi, n_k=n_k, use_mask=use_mask,
    )

    return pl.pallas_call(
        kernel,
        out_shape=jax.ShapeDtypeStruct((r, 1), x2d.dtype),
        grid_spec=pltpu.PrefetchScalarGridSpec(
            num_scalar_prefetch=0,
            grid=(pl.cdiv(r, tile_r), n_k),
            in_specs=[pl.BlockSpec((tile_r, tile_t), lambda i, k: (i, k + k0))],
            out_specs=pl.BlockSpec((tile_r, 1), lambda i, k: (i, 0)),
            scratch_shapes=[pltpu.VMEM((tile_r, 1), jnp.float32)],
        ),
        compiler_params=pltpu.CompilerParams(
            dimension_semantics=("parallel", "arbitrary"),
            vmem_limit_bytes=_VMEM_LIMIT_BYTES,
        ),
    )(x2d)


class TimeAverage:
    """JAX/Pallas port of the PyTorch TimeAverage estimator."""

    def __init__(self, window=None):
        # Keep the window on the host (it is static configuration, like the torch buffer).
        self.w_np = None if window is None else np.asarray(window, dtype=np.int64)

    def __call__(self, x: jax.Array) -> jax.Array:
        lead = x.shape[:-1]
        t = x.shape[-1]

        if self.w_np is None:
            lo, hi, n_valid = 0, t, t
            x2d = x.reshape((-1, t))
        else:
            w = np.where(self.w_np < 0, self.w_np + t, self.w_np)   # torch-style negatives
            n_valid = int(w.size)
            contiguous = n_valid > 0 and np.array_equal(
                w, np.arange(w[0], w[0] + n_valid, dtype=w.dtype))
            if contiguous:
                # Fuse the window into the kernel grid/mask: single HBM pass.
                lo, hi = int(w[0]), int(w[0]) + n_valid
                x2d = x.reshape((-1, t))
            else:
                # TODO(synk): genuinely non-contiguous windows fall back to an XLA
                # gather (extra HBM pass); only contiguous windows are fused.
                x2d = jnp.take(x, jnp.asarray(w, dtype=jnp.int32), axis=-1)
                x2d = x2d.reshape((-1, n_valid))
                lo, hi = 0, n_valid

        out2d = _mean_window_pallas(x2d, lo, hi, n_valid)
        return out2d.reshape(lead + (1,))


if __name__ == "__main__":
    key = jax.random.PRNGKey(0)
    # Scattering-coefficient-like input: (batch, channels, paths, time)
    B, C, P, T = 2, 4, 3, 64
    x = jax.random.normal(key, (B, C, P, T), dtype=jnp.float32)

    # Case 1: no window -> plain mean over time
    y_full = jax.block_until_ready(TimeAverage(window=None)(x))
    ref_full = jnp.mean(x, axis=-1, keepdims=True)
    assert y_full.shape == (B, C, P, 1)
    np.testing.assert_allclose(np.asarray(y_full), np.asarray(ref_full),
                               rtol=1e-5, atol=1e-5)

    # Case 2: contiguous window (fused into the kernel as grid offset + mask)
    window = np.arange(8, 40)
    y_win = jax.block_until_ready(TimeAverage(window=window)(x))
    ref_win = jnp.mean(x[..., jnp.asarray(window)], axis=-1, keepdims=True)
    assert y_win.shape == (B, C, P, 1)
    np.testing.assert_allclose(np.asarray(y_win), np.asarray(ref_win),
                               rtol=1e-5, atol=1e-5)

    # Case 3: non-contiguous window (gather fallback path)
    window_nc = np.array([3, 60, 7, 7, 31])
    y_nc = jax.block_until_ready(TimeAverage(window=window_nc)(x))
    ref_nc = jnp.mean(x[..., jnp.asarray(window_nc)], axis=-1, keepdims=True)
    assert y_nc.shape == (B, C, P, 1)
    np.testing.assert_allclose(np.asarray(y_nc), np.asarray(ref_nc),
                               rtol=1e-5, atol=1e-5)

    print("KERNEL_OK")
</pallas_src>

<mosaic_0001>
module attributes {stable_mosaic.version = 11 : i64} {
  func.func @_time_mean_kernel(%arg0: i32, %arg1: i32, %arg2: memref<16x64xf32, #tpu.memory_space<vmem>>, %arg3: memref<16x1xf32, #tpu.memory_space<vmem>>, %arg4: memref<16x1xf32, #tpu.memory_space<vmem>>) attributes {dimension_semantics = [#tpu.dimension_semantics<parallel>, #tpu.dimension_semantics<arbitrary>], iteration_bounds = array<i64: 2, 1>, scalar_prefetch = 0 : i64, scratch_operands = 1 : i64, tpu.core_type = #tpu.core_type<tc>, window_params = [{transform_indices = @transform_0, window_bounds = array<i64: 16, 64>}, {transform_indices = @transform_1, window_bounds = array<i64: 16, 1>}]} {
    %c0_i32 = arith.constant 0 : i32
    %0 = arith.cmpi eq, %arg1, %c0_i32 : i32
    %1 = arith.extui %0 : i1 to i32
    %c0_i32_0 = arith.constant 0 : i32
    %2 = arith.cmpi ne, %1, %c0_i32_0 : i32
    scf.if %2 {
      %cst_8 = arith.constant 0.000000e+00 : f32
      %12 = vector.broadcast %cst_8 : f32 to vector<16x1xf32>
      %c0_9 = arith.constant 0 : index
      %c0_10 = arith.constant 0 : index
      %13 = vector.load %arg4[%c0_9, %c0_10] : memref<16x1xf32, #tpu.memory_space<vmem>>, vector<16x1xf32>
      tpu.vector_store %arg4[%c0_9, %c0_10], %12 {strides = array<i32>} : memref<16x1xf32, #tpu.memory_space<vmem>>, vector<16x1xf32>,
    } else {
    }
    %c0 = arith.constant 0 : index
    %c0_1 = arith.constant 0 : index
    %3 = vector.load %arg2[%c0, %c0_1] : memref<16x64xf32, #tpu.memory_space<vmem>>, vector<16x64xf32>
    %c0_2 = arith.constant 0 : index
    %c0_3 = arith.constant 0 : index
    %4 = vector.load %arg4[%c0_2, %c0_3] : memref<16x1xf32, #tpu.memory_space<vmem>>, vector<16x1xf32>
    %cst = arith.constant dense<0.000000e+00> : vector<16xf32>
    %5 = vector.multi_reduction <add>, %3, %cst [1] : vector<16x64xf32> to vector<16xf32>
    %6 = vector.shape_cast %5 : vector<16xf32> to vector<16x1xf32>
    %7 = arith.addf %4, %6 : vector<16x1xf32>
    %c0_4 = arith.constant 0 : index
    %c0_5 = arith.constant 0 : index
    %8 = vector.load %arg4[%c0_4, %c0_5] : memref<16x1xf32, #tpu.memory_space<vmem>>, vector<16x1xf32>
    tpu.vector_store %arg4[%c0_4, %c0_5], %7 {strides = array<i32>} : memref<16x1xf32, #tpu.memory_space<vmem>>, vector<16x1xf32>,
    %c0_i32_6 = arith.constant 0 : i32
    %9 = arith.cmpi eq, %arg1, %c0_i32_6 : i32
    %10 = arith.extui %9 : i1 to i32
    %c0_i32_7 = arith.constant 0 : i32
    %11 = arith.cmpi ne, %10, %c0_i32_7 : i32
    scf.if %11 {
      %c0_8 = arith.constant 0 : index
      %c0_9 = arith.constant 0 : index
      %12 = vector.load %arg4[%c0_8, %c0_9] : memref<16x1xf32, #tpu.memory_space<vmem>>, vector<16x1xf32>
      %cst_10 = arith.constant 1.562500e-02 : f32
      %13 = vector.broadcast %cst_10 : f32 to vector<16x1xf32>
      %14 = arith.mulf %12, %13 : vector<16x1xf32>
      %c0_11 = arith.constant 0 : index
      %c0_12 = arith.constant 0 : index
      %15 = vector.load %arg3[%c0_11, %c0_12] : memref<16x1xf32, #tpu.memory_space<vmem>>, vector<16x1xf32>
      tpu.vector_store %arg3[%c0_11, %c0_12], %14 {strides = array<i32>} : memref<16x1xf32, #tpu.memory_space<vmem>>, vector<16x1xf32>,
    } else {
    }
    return
  }
  func.func @transform_0(%arg0: i32, %arg1: i32) -> (i32, i32) {
    %c0_i32 = arith.constant 0 : i32
    %0 = arith.addi %arg1, %c0_i32 : i32
    %c0_i32_0 = arith.constant 0 : i32
    return %arg0, %0 : i32, i32
  }
  func.func @transform_1(%arg0: i32, %arg1: i32) -> (i32, i32) {
    %c0_i32 = arith.constant 0 : i32
    %c0_i32_0 = arith.constant 0 : i32
    return %arg0, %c0_i32 : i32, i32
  }
}

</mosaic_0001>

<llo_original>
// kernel: tpu_custom_call.1
$region0: #{tpu_custom_call.1}
  #allocation0 [shape = 'u32[]', space=smem, size = 0x4, offset = 0x4, fixed_abs, tag = 'smem constant byte address 0x4 - core index']
  #allocation1 [shape = 'u32[144,128]{1,0:T(1,128)}', space=vmem, size = 0x12000, scoped, tag = 'internal scratch']
  #allocation2 [shape = 'f32[16,1]{1,0:T(8,128)}', space=vmem, size = 0x2000, scoped, tag = 'scratch operand']
  %s0 = inlined_call_operand.hbm [shape: f32[24,64], index: 0, kind: input, shape index: {}]
  %s1 = inlined_call_operand.vmem [shape: f32[24,1], index: 1, kind: output, shape index: {}]
  %s2 = sld [smem:[#allocation0]]
  $region97: #{tpu_custom_call.1} parent=0
    _
  %s4 = ssub.s32 1, %s2
  %s5 = scalar_select 0, %s4, %s2
  $region1: #{tpu_custom_call.1} parent=0
    #allocation3 [shape = 'u8[16384]{0}', space=vmem, size = 0x4000, scoped, tag = 'input window, operand 0']
    #allocation4 [shape = 's32[2]{0}', space=sflag, size = 0x8, scoped, tag = 'scoped memory for tpu_custom_call.1']
    #allocation5 [shape = 'u8[16384]{0}', space=vmem, size = 0x4000, scoped, tag = 'output window, operand 0']
    %6 = vsyncpa [#allocation4], 0
    %s7 = scalar_lea.sflag [#allocation4], 1
    %8 = vsyncpa %s7, 0
    loop: start=0, step=1, limit=4
    $region2: #{tpu_custom_call.1} parent=1 // loop_pre_header
      _
    $region3: #{tpu_custom_call.1} parent=1 // loop_header
      %s10 = sphi 0, %s14
      %p11 = scmp.ge.s32.totalorder %s10, 4
      %s17 = sphi 0, %s29
      %s18 = sphi 0, %s25
      %s19 = sphi 0, %s17
      %s20 = sphi 0, %s18
      %s21 = sphi 0, %s19
      %s22 = sphi 0, %s20
      %s34 = sphi 0, %s36
      %s37 = sphi 0, %s34
      %s38 = sphi 0, %s37
      %s54 = sphi 0, %s38
      %s60 = sphi 0, %s62
      %s63 = sphi 0, %s60
      %s64 = sphi 0, %s63
      %s80 = sphi 0, %s64
    $region4: #{tpu_custom_call.1} parent=1 // loop_header_branch
      %13 = sbr.rel (%p11) target = $region8
    $region5: #{tpu_custom_call.1} parent=1 // loop_body
      %s15 = ssub.s32 %s10, 1
      %s16 = ssub.s32 %s10, 2
      %s23 = sadd.s32 1, %s18
      %p24 = scmp.ge.s32.totalorder %s23, 1
      %s25 = scalar_select %p24, 0, %s23
      %s26 = sadd.s32 1, %s17
      %s27 = scalar_select %p24, %s26, %s17
      %p28 = scmp.ge.s32.totalorder %s27, 2
      %s29 = scalar_select %p28, 0, %s27
      %s30 = ssub.s32 %s17, %s29
      %s31 = ssub.s32 %s18, %s25
      %s32 = sor.u32 %s30, %s31
      %p33 = scmp.eq.s32.totalorder %s32, 0
      %s35 = sadd.s32 %s34, 1
      %s36 = scalar_select %p33, %s34, %s35
      %p39 = pneg %p33
      %p40 = scmp.eq.s32.totalorder %s10, 1
      %p41 = por %p39, %p40
      %p42 = scmp.ne.s32.totalorder %s34, %s37
      %p43 = scmp.eq.s32.totalorder %s10, 0
      %p44 = por %p42, %p43
      %p45 = scmp.ne.s32.totalorder %s34, %s37
      %p46 = scmp.eq.s32.totalorder %s15, 1
      %p47 = por %p45, %p46
      %p48 = scmp.ne.s32.totalorder %s37, %s38
      %p49 = scmp.eq.s32.totalorder %s15, 0
      %p50 = por %p48, %p49
      %p51 = scmp.ne.s32.totalorder %s37, %s38
      %p52 = scmp.eq.s32.totalorder %s16, 1
      %p53 = por %p51, %p52
      %p55 = scmp.ne.s32.totalorder %s38, %s54
      %p56 = scmp.eq.s32.totalorder %s16, 0
      %p57 = por %p55, %p56
      %s58 = ssub.s32 %s17, %s29
      %p59 = scmp.eq.s32.totalorder %s58, 0
      %s61 = sadd.s32 %s60, 1
      %s62 = scalar_select %p59, %s60, %s61
      %p65 = pneg %p59
      %p66 = scmp.eq.s32.totalorder %s10, 1
      %p67 = por %p65, %p66
      %p68 = scmp.ne.s32.totalorder %s60, %s63
      %p69 = scmp.eq.s32.totalorder %s10, 0
      %p70 = por %p68, %p69
      %p71 = scmp.ne.s32.totalorder %s60, %s63
      %p72 = scmp.eq.s32.totalorder %s15, 1
      %p73 = por %p71, %p72
      %p74 = scmp.ne.s32.totalorder %s63, %s64
      %p75 = scmp.eq.s32.totalorder %s15, 0
      %p76 = por %p74, %p75
      %p77 = scmp.ne.s32.totalorder %s63, %s64
      %p78 = scmp.eq.s32.totalorder %s16, 1
      %p79 = por %p77, %p78
      %p81 = scmp.ne.s32.totalorder %s64, %s80
      %p82 = scmp.eq.s32.totalorder %s16, 0
      %p83 = por %p81, %p82
      %p84 = scmp.le.s32.totalorder 1, %s10
      %p85 = scmp.lt.s32.totalorder %s10, 3
      %p86 = pnand %p84, %p85
      %p87 = pneg %p86
      // Predicated region
      $region9: #{tpu_custom_call.1} parent=5 // pred_check
        _
      $region10: #{tpu_custom_call.1} parent=5 // pred_check_branch
        %89 = sbr.rel (%p86) target = $region12
      $region11: #{tpu_custom_call.1} parent=5 // pred_region
        %s90 = ssub.s32 %s10, 1
      $region12: #{tpu_custom_call.1} parent=5 // pred_fallthru
        _
      %p91 = scmp.lt.s32.totalorder %s10, 2
      // Predicated region
      $region13: #{tpu_custom_call.1} parent=5 // pred_check
        %p92 = pneg %p91
      $region14: #{tpu_custom_call.1} parent=5 // pred_check_branch
        %94 = sbr.rel (%p92) target = $region16
      $region15: #{tpu_custom_call.1} parent=5 // pred_region
        // Predicated region
        $region17: #{tpu_custom_call.1} parent=15 // pred_check
          %p95 = pneg %p44
        $region18: #{tpu_custom_call.1} parent=15 // pred_check_branch
          %97 = sbr.rel (%p95) target = $region20
        $region19: #{tpu_custom_call.1} parent=15 // pred_region
          %s98 = sand.u32 %s34, 1
          %s99 = scalar_lea.sflag [#allocation4], %s98
          %s100 = sand.u32 %s34, 1
          %s101 = smul.addr %s100, 16
          %s102 = scalar_lea.vmem [#allocation3], %s101
          %s103 = smul.u32 2, %s17
          %s104 = ssub.s32 3, %s103
          %p105 = scmp.lt.s32.totalorder %s104, 2
          %s106 = scalar_select %p105, %s104, 2
          %s107 = smul.u32 128, %s106
          %s109 = ssub.s32 256, %s107
          %110 = vsyncadd %s99, %s109
          %p111 = scmp.ne.s32.totalorder 0, %s107
          %s112 = sadd.s32 %s18, %s103
          %s113 = smul.addr %s112, 128
          %s114 = scalar_lea.hbm %s0, %s113
          %s115 = smul.u32 8, %s106
          %s116 = sshll.u32 %s102, 4
          %s117 = int_to_ptr.vmem [resolvable:$true] %s116
          %s118 = sshll.u32 %s115, 4
          %122 = dma.hbm_to_vmem [thread:$0]  (%p111), %s114, %s118, %s117, %s99, 128, 128, 8
        $region20: #{tpu_custom_call.1} parent=15 // pred_fallthru
          _
      $region16: #{tpu_custom_call.1} parent=5 // pred_fallthru
        _
      %p123 = scmp.le.s32.totalorder 1, %s10
      %p124 = scmp.lt.s32.totalorder %s10, 3
      %p125 = pnand %p123, %p124
      %p126 = pneg %p125
      // Predicated region
      $region21: #{tpu_custom_call.1} parent=5 // pred_check
        _
      $region22: #{tpu_custom_call.1} parent=5 // pred_check_branch
        %128 = sbr.rel (%p125) target = $region24
      $region23: #{tpu_custom_call.1} parent=5 // pred_region
        %s129 = ssub.s32 %s10, 1
        %s130 = sand.u32 %s37, 1
        %s131 = scalar_lea.sflag [#allocation4], %s130
        %s132 = sand.u32 %s37, 1
        %s133 = smul.addr %s132, 16
        %s134 = scalar_lea.vmem [#allocation3], %s133
        // Predicated region
        $region25: #{tpu_custom_call.1} parent=23 // pred_check
          %p135 = pneg %p50
        $region26: #{tpu_custom_call.1} parent=23 // pred_check_branch
          %137 = sbr.rel (%p135) target = $region28
        $region27: #{tpu_custom_call.1} parent=23 // pred_region
          %138 = dma.done %s131, 256
        $region28: #{tpu_custom_call.1} parent=23 // pred_fallthru
          _
        %s139 = sand.u32 %s37, 1
        %s140 = scalar_lea.sflag [#allocation4], %s139
        %s141 = sand.u32 %s37, 1
        %s142 = smul.addr %s141, 16
        %s143 = scalar_lea.vmem [#allocation3], %s142
        %p144 = pneg %p50
        %p145 = pneg %p47
        %p146 = pneg %p76
        %p147 = pneg %p73
        %s148 = sand.u32 %s63, 1
        %s149 = sand.u32 %s63, 1
        %s150 = smul.addr %s149, 16
        %s151 = scalar_lea.vmem [#allocation5], %s150
        %s152 = smul.u32 2, %s19
        %s153 = ssub.s32 3, %s152
        %p154 = scmp.lt.s32.totalorder %s153, 2
        %s155 = scalar_select %p154, %s153, 2
        %s156 = smul.u32 128, %s155
        %s157 = smul.u32 2, %s19
        %s158 = ssub.s32 3, %s157
        %p159 = scmp.lt.s32.totalorder %s158, 2
        %s160 = scalar_select %p159, %s158, 2
        %s161 = smul.u32 128, %s160
        %p162 = scmp.eq.s32.totalorder %s20, 0
        // Predicated region
        $region29: #{tpu_custom_call.1} parent=23 // pred_check
          %p163 = pneg %p162
        $region30: #{tpu_custom_call.1} parent=23 // pred_check_branch
          %165 = sbr.rel (%p163) target = $region32
        $region31: #{tpu_custom_call.1} parent=23 // pred_region
          %vm166 = vcmask 7168
          %167 = vst.msk [vmem:[#allocation2] sm:$0xff] %vm166, 0.0
          %168 = vst.msk [vmem:[#allocation2 + $0x8] sm:$0xff] %vm166, 0.0
        $region32: #{tpu_custom_call.1} parent=23 // pred_fallthru
          _
        %v169 = vld [vmem:[%s134] sm:$0xff]
        %v170 = vld [vmem:[%s134 + $0x8] sm:$0xff]
        %v171 = vld [vmem:[#allocation2] sm:$0xff]
        %v172 = vld [vmem:[#allocation2 + $0x8] sm:$0xff]
        %vm173 = vcmask 523264
        %v174 = vsel %vm173, %v169, 0.0
        %175 = vadd.xlane.f32.xlu0 %v174
        %v176 = vpop.xlane.xlu0 %175
        %v177 = vsel %vm173, %v170, 0.0
        %178 = vadd.xlane.f32.xlu0 %v177
        %v179 = vpop.xlane.xlu0 %178
        %v180 = vadd.f32 %v171, %v176
        %v181 = vadd.f32 %v172, %v179
        %vm182 = vcmask 7168
        %183 = vst.msk [vmem:[#allocation2] sm:$0xff] %vm182, %v180
        %184 = vst.msk [vmem:[#allocation2 + $0x8] sm:$0xff] %vm182, %v181
        // Predicated region
        $region33: #{tpu_custom_call.1} parent=23 // pred_check
          %p185 = pneg %p162
        $region34: #{tpu_custom_call.1} parent=23 // pred_check_branch
          %187 = sbr.rel (%p185) target = $region36
        $region35: #{tpu_custom_call.1} parent=23 // pred_region
          %v188 = vld [vmem:[#allocation2] sm:$0xff]
          %v189 = vld [vmem:[#allocation2 + $0x8] sm:$0xff]
          %v190 = vmul.f32 %v188, 0.015625
          %v191 = vmul.f32 %v189, 0.015625
          %192 = vst.msk [vmem:[%s151] sm:$0xff] %vm182, %v190
          %193 = vst.msk [vmem:[%s151 + $0x8] sm:$0xff] %vm182, %v191
        $region36: #{tpu_custom_call.1} parent=23 // pred_fallthru
          _
        %s194 = sand.u32 %s63, 1
        %s195 = sand.u32 %s63, 1
        %s196 = smul.addr %s195, 16
        %s197 = scalar_lea.vmem [#allocation5], %s196
        // Predicated region
        $region37: #{tpu_custom_call.1} parent=23 // pred_check
          %p198 = pneg %p73
        $region38: #{tpu_custom_call.1} parent=23 // pred_check_branch
          %200 = sbr.rel (%p198) target = $region40
        $region39: #{tpu_custom_call.1} parent=23 // pred_region
          %s201 = smul.u32 2, %s19
          %s202 = ssub.s32 3, %s201
          %p203 = scmp.lt.s32.totalorder %s202, 2
          %s204 = scalar_select %p203, %s202, 2
          %s205 = smul.u32 128, %s204
          %p206 = scmp.ne.s32.totalorder 0, %s205
          %s207 = smul.addr %s201, 8
          %s208 = scalar_lea.vmem %s1, %s207
          // Predicated region
          $region41: #{tpu_custom_call.1} parent=39 // pred_check
            %p209 = pneg %p206
          $region42: #{tpu_custom_call.1} parent=39 // pred_check_branch
            %211 = sbr.rel (%p209) target = $region44
          $region43: #{tpu_custom_call.1} parent=39 // pred_region
            // Predicated region
            $region45: #{tpu_custom_call.1} parent=43 // pred_check
              _
            $region46: #{tpu_custom_call.1} parent=43 // pred_check_branch
              %213 = sbr.rel (0) target = $region48
            $region47: #{tpu_custom_call.1} parent=43 // pred_region
              // Predicated region
              $region67: #{tpu_custom_call.1} parent=47 // pred_check
                _
              $region68: #{tpu_custom_call.1} parent=47 // pred_check_branch
                %264 = sbr.rel (0) target = $region70
              $region69: #{tpu_custom_call.1} parent=47 // pred_region
                %s265 = sshrl.u32 %s204, 1
                // While loop
                $region71: #{tpu_custom_call.1} parent=69 // loop_pre_header
                  _
                $region72: #{tpu_custom_call.1} parent=69 // loop_header
                  %s267 = sphi 0, %s269
                  %p268 = scmp.ge.s32.totalorder %s267, %s265
                  %s272 = sphi 0, %s281
                  %s273 = sphi %s197, %s284
                  %s274 = sphi %s208, %s285
                $region73: #{tpu_custom_call.1} parent=69 // loop_header_branch
                  %271 = sbr.rel (%p268) target = $region77
                $region74: #{tpu_custom_call.1} parent=69 // loop_body
                  %v275 = vld [vmem:[%s273] sm:$0xff]
                  %276 = vst [vmem:[%s274] sm:$0xff] %v275
                  %v277 = vld [vmem:[%s273 + $0x8] sm:$0xff]
                  %278 = vst [vmem:[%s274 + $0x8] sm:$0xff] %v277
                  %s279 = sadd.s32 1, %s272
                  %p280 = scmp.ge.s32.totalorder %s279, %s265
                  %s281 = scalar_select %p280, 0, %s279
                  %s282 = smul.u32 %s281, 16
                  %s283 = smul.u32 %s281, 16
                  %s284 = scalar_lea.vmem %s197, %s282 [#allocation5]
                  %s285 = scalar_lea.vmem %s208, %s283
                $region75: #{tpu_custom_call.1} parent=69 // loop_footer
                  %s269 = sadd.s32 %s267, 1
                $region76: #{tpu_custom_call.1} parent=69 // loop_footer_branch
                  %266 = sbr.rel target = $region72
                $region77: #{tpu_custom_call.1} parent=69 // loop_exit
                  _
                %s286 = sshrl.u32 %s204, 1
                %s287 = sand.u32 %s204, 1
                %s288 = smul.u32 %s286, 2
                %s289 = smul.u32 8, %s288
                %s290 = scalar_lea.vmem %s197, %s289 [#allocation5]
                %s291 = smul.u32 8, %s288
                %s292 = scalar_lea.vmem %s208, %s291
                // While loop
                $region78: #{tpu_custom_call.1} parent=69 // loop_pre_header
                  _
                $region79: #{tpu_custom_call.1} parent=69 // loop_header
                  %s294 = sphi 0, %s296
                  %p295 = scmp.ge.s32.totalorder %s294, %s287
                  %s299 = sphi 0, %s306
                  %s300 = sphi %s290, %s309
                  %s301 = sphi %s292, %s310
                $region80: #{tpu_custom_call.1} parent=69 // loop_header_branch
                  %298 = sbr.rel (%p295) target = $region84
                $region81: #{tpu_custom_call.1} parent=69 // loop_body
                  %v302 = vld [vmem:[%s300] sm:$0xff]
                  %303 = vst [vmem:[%s301] sm:$0xff] %v302
                  %s304 = sadd.s32 1, %s299
                  %p305 = scmp.ge.s32.totalorder %s304, %s287
                  %s306 = scalar_select %p305, 0, %s304
                  %s307 = smul.u32 %s306, 8
                  %s308 = smul.u32 %s306, 8
                  %s309 = scalar_lea.vmem %s290, %s307 [#allocation5]
                  %s310 = scalar_lea.vmem %s292, %s308
                $region82: #{tpu_custom_call.1} parent=69 // loop_footer
                  %s296 = sadd.s32 %s294, 1
                $region83: #{tpu_custom_call.1} parent=69 // loop_footer_branch
                  %293 = sbr.rel target = $region79
                $region84: #{tpu_custom_call.1} parent=69 // loop_exit
                  _
              $region70: #{tpu_custom_call.1} parent=47 // pred_fallthru
                _
              // Predicated region
              $region85: #{tpu_custom_call.1} parent=47 // pred_check
                _
              $region86: #{tpu_custom_call.1} parent=47 // pred_check_branch
                %312 = sbr.rel target = $region88
              $region87: #{tpu_custom_call.1} parent=47 // pred_region
                _
              $region88: #{tpu_custom_call.1} parent=47 // pred_fallthru
                _
            $region48: #{tpu_custom_call.1} parent=43 // pred_fallthru
              _
            // Predicated region
            $region49: #{tpu_custom_call.1} parent=43 // pred_check
              _
            $region50: #{tpu_custom_call.1} parent=43 // pred_check_branch
              %215 = sbr.rel target = $region52
            $region51: #{tpu_custom_call.1} parent=43 // pred_region
              %s217 = sshrl.u32 %s204, 1
              // While loop
              $region53: #{tpu_custom_call.1} parent=51 // loop_pre_header
                _
              $region54: #{tpu_custom_call.1} parent=51 // loop_header
                %s219 = sphi 0, %s221
                %p220 = scmp.ge.s32.totalorder %s219, %s217
                %s224 = sphi 0, %s233
                %s225 = sphi %s197, %s236
                %s226 = sphi %s208, %s237
              $region55: #{tpu_custom_call.1} parent=51 // loop_header_branch
                %223 = sbr.rel (%p220) target = $region59
              $region56: #{tpu_custom_call.1} parent=51 // loop_body
                %v227 = vld [vmem:[%s225] sm:$0xff]
                %228 = vst [vmem:[%s226] sm:$0xff] %v227
                %v229 = vld [vmem:[%s225 + $0x8] sm:$0xff]
                %230 = vst [vmem:[%s226 + $0x8] sm:$0xff] %v229
                %s231 = sadd.s32 1, %s224
                %p232 = scmp.ge.s32.totalorder %s231, %s217
                %s233 = scalar_select %p232, 0, %s231
                %s234 = smul.u32 %s233, 16
                %s235 = smul.u32 %s233, 16
                %s236 = scalar_lea.vmem %s197, %s234 [#allocation5]
                %s237 = scalar_lea.vmem %s208, %s235
              $region57: #{tpu_custom_call.1} parent=51 // loop_footer
                %s221 = sadd.s32 %s219, 1
              $region58: #{tpu_custom_call.1} parent=51 // loop_footer_branch
                %218 = sbr.rel target = $region54
              $region59: #{tpu_custom_call.1} parent=51 // loop_exit
                _
              %s238 = sshrl.u32 %s204, 1
              %s239 = sand.u32 %s204, 1
              %s240 = smul.u32 %s238, 2
              %s241 = smul.u32 8, %s240
              %s242 = scalar_lea.vmem %s197, %s241 [#allocation5]
              %s243 = smul.u32 8, %s240
              %s244 = scalar_lea.vmem %s208, %s243
              // While loop
              $region60: #{tpu_custom_call.1} parent=51 // loop_pre_header
                _
              $region61: #{tpu_custom_call.1} parent=51 // loop_header
                %s246 = sphi 0, %s248
                %p247 = scmp.ge.s32.totalorder %s246, %s239
                %s251 = sphi 0, %s258
                %s252 = sphi %s242, %s261
                %s253 = sphi %s244, %s262
              $region62: #{tpu_custom_call.1} parent=51 // loop_header_branch
                %250 = sbr.rel (%p247) target = $region66
              $region63: #{tpu_custom_call.1} parent=51 // loop_body
                %v254 = vld [vmem:[%s252] sm:$0xff]
                %255 = vst [vmem:[%s253] sm:$0xff] %v254
                %s256 = sadd.s32 1, %s251
                %p257 = scmp.ge.s32.totalorder %s256, %s239
                %s258 = scalar_select %p257, 0, %s256
                %s259 = smul.u32 %s258, 8
                %s260 = smul.u32 %s258, 8
                %s261 = scalar_lea.vmem %s242, %s259 [#allocation5]
                %s262 = scalar_lea.vmem %s244, %s260
              $region64: #{tpu_custom_call.1} parent=51 // loop_footer
                %s248 = sadd.s32 %s246, 1
              $region65: #{tpu_custom_call.1} parent=51 // loop_footer_branch
                %245 = sbr.rel target = $region61
              $region66: #{tpu_custom_call.1} parent=51 // loop_exit
                _
            $region52: #{tpu_custom_call.1} parent=43 // pred_fallthru
              _
          $region44: #{tpu_custom_call.1} parent=39 // pred_fallthru
            _
          %313 = vnop
        $region40: #{tpu_custom_call.1} parent=23 // pred_fallthru
          _
      $region24: #{tpu_custom_call.1} parent=5 // pred_fallthru
        _
      %p314 = scmp.le.s32.totalorder 2, %s10
      // Predicated region
      $region89: #{tpu_custom_call.1} parent=5 // pred_check
        %p315 = pneg %p314
      $region90: #{tpu_custom_call.1} parent=5 // pred_check_branch
        %317 = sbr.rel (%p315) target = $region92
      $region91: #{tpu_custom_call.1} parent=5 // pred_region
        %s318 = ssub.s32 %s10, 2
        // Predicated region
        $region93: #{tpu_custom_call.1} parent=91 // pred_check
          %p319 = pneg %p79
        $region94: #{tpu_custom_call.1} parent=91 // pred_check_branch
          %321 = sbr.rel (%p319) target = $region96
        $region95: #{tpu_custom_call.1} parent=91 // pred_region
          %s322 = sand.u32 %s64, 1
          %s323 = sand.u32 %s64, 1
          %s324 = smul.addr %s323, 16
          %s325 = scalar_lea.vmem [#allocation5], %s324
        $region96: #{tpu_custom_call.1} parent=91 // pred_fallthru
          _
      $region92: #{tpu_custom_call.1} parent=5 // pred_fallthru
        _
    $region6: #{tpu_custom_call.1} parent=1 // loop_footer
      %s14 = sadd.s32 1, %s10
    $region7: #{tpu_custom_call.1} parent=1 // loop_footer_branch
      %9 = sbr.rel target = $region3
    $region8: #{tpu_custom_call.1} parent=1 // loop_exit
      _
    %326 = vsyncpa [#allocation4], 1
    %s327 = scalar_lea.sflag [#allocation4], 1
    %328 = vsyncpa %s327, 1

</llo_original>
